<compile_context>
chip_gen: v7x
topology: tpu7x:2x2x1
jax: 0.10.0
libtpu: 0.0.40
codegen_flags: <defaults>
</compile_context>

<pallas_src>
import functools

import jax
import jax.numpy as jnp
from jax import lax
from jax.experimental import pallas as pl
from jax.experimental.pallas import tpu as pltpu


_LANE = 128


@functools.lru_cache(maxsize=1)
def _vmem_budgets():
    """(F-tile budget bytes, scoped VMEM limit bytes) for this TPU generation."""
    cap = 64 * 1024 * 1024  # conservative default (v7x physical VMEM)
    try:
        info = pltpu.get_tpu_info()
        cap = int(getattr(info, "vmem_capacity_bytes", cap))
    except Exception:
        pass
    if cap >= 100 * 1024 * 1024:
        # v5e / v6e: 128 MiB physical VMEM -> big tiles, high scoped limit.
        return 32 * 1024 * 1024, 96 * 1024 * 1024
    # v7x: only 64 MiB physical VMEM -> leave headroom.
    return 20 * 1024 * 1024, 48 * 1024 * 1024


def _plan_k_tiling(m, kdim, itemsize):
    """Pick a lane-aligned K tile that fits the per-generation VMEM budget."""
    tile_budget, vmem_limit = _vmem_budgets()
    # Resident for the whole grid: (M, M) f32 accumulator/output (+ target).
    resident = 3 * m * m * 4
    f_budget = tile_budget - resident
    if f_budget < 2 * m * _LANE * itemsize:
        # TODO(synk): add an M-tiled Gram variant once the (M, M) buffers no
        # longer leave room for a lane-aligned, double-buffered K tile.
        raise ValueError(
            f"StyleLoss Pallas kernel: M={m} too large for the single-block "
            "Gram accumulator")
    tk = (f_budget // (2 * m * itemsize)) // _LANE * _LANE
    k_round = pl.cdiv(kdim, _LANE) * _LANE
    tk = max(_LANE, min(tk, k_round))
    grid_k = pl.cdiv(kdim, tk)
    ragged = (kdim % tk) != 0
    return tk, grid_k, ragged, vmem_limit


def _masked_tile(f_ref, kk, tk, k_total, ragged):
    """Load the current F tile; zero lanes past the true K extent if ragged."""
    f = f_ref[...]                      # native dtype, no cast
    if ragged:                          # static (trace-time) decision
        lane = lax.broadcasted_iota(jnp.int32, f.shape, 1)
        rem = k_total - kk * tk
        f = jnp.where(lane < rem, f, jnp.zeros_like(f))
    return f


# ----------------------------------------------------------------------------
# Kernel 1: Gram matrix   G = (F @ F.T) / (a*b*c*d)
# K-tiled; accumulates directly into the resident (M, M) f32 output block.
# ----------------------------------------------------------------------------
def _gram_kernel(f_ref, g_ref, *, inv_denom, k_total, tk, ragged):
    kk = pl.program_id(0)

    @pl.when(kk == 0)
    def _():
        g_ref[...] = jnp.zeros_like(g_ref)

    f = _masked_tile(f_ref, kk, tk, k_total, ragged)
    # Contract axis 1 of both operands: F @ F.T without materializing F.T.
    g_ref[...] += lax.dot_general(
        f, f,
        dimension_numbers=(((1,), (1,)), ((), ())),
        preferred_element_type=jnp.float32,
    )

    @pl.when(kk == pl.num_programs(0) - 1)
    def _():
        g_ref[...] = g_ref[...] * inv_denom


@jax.jit
def _gram_matrix_impl(x):
    a, b, c, d = x.shape
    m, kdim = a * b, c * d
    inv_denom = 1.0 / float(a * b * c * d)

    f = x.reshape(m, kdim)                       # no pad, no dtype cast
    itemsize = jnp.dtype(x.dtype).itemsize
    tk, grid_k, ragged, vmem_limit = _plan_k_tiling(m, kdim, itemsize)

    return pl.pallas_call(
        functools.partial(_gram_kernel, inv_denom=inv_denom,
                          k_total=kdim, tk=tk, ragged=ragged),
        out_shape=jax.ShapeDtypeStruct((m, m), jnp.float32),
        grid_spec=pltpu.PrefetchScalarGridSpec(
            num_scalar_prefetch=0,
            grid=(grid_k,),
            in_specs=[pl.BlockSpec((m, tk), lambda kk: (0, kk))],
            out_specs=pl.BlockSpec((m, m), lambda kk: (0, 0)),
        ),
        compiler_params=pltpu.CompilerParams(
            dimension_semantics=("arbitrary",),
            vmem_limit_bytes=vmem_limit),
    )(f)


def gram_matrix(x):
    """x: (a, b, c, d) NCHW feature map -> (a*b, a*b) float32 Gram matrix."""
    return _gram_matrix_impl(x)


# ----------------------------------------------------------------------------
# Kernel 2: fused StyleLoss hot path (K-tiled):
#   acc += F_k @ F_k.T per tile; finalize: G = acc*inv_denom,
#   loss = mean(|G - target|)
# ----------------------------------------------------------------------------
def _style_loss_kernel(f_ref, t_ref, loss_ref, acc_ref, *,
                       inv_denom, inv_elems, k_total, tk, ragged):
    kk = pl.program_id(0)

    @pl.when(kk == 0)
    def _():
        acc_ref[...] = jnp.zeros_like(acc_ref)

    f = _masked_tile(f_ref, kk, tk, k_total, ragged)
    acc_ref[...] += lax.dot_general(
        f, f,
        dimension_numbers=(((1,), (1,)), ((), ())),
        preferred_element_type=jnp.float32,
    )

    # Epilogue (scale + abs-diff + mean) runs exactly once on the resident
    # accumulator, so the steady-state loop stays DMA/MXU-bound.
    @pl.when(kk == pl.num_programs(0) - 1)
    def _():
        g = acc_ref[...] * inv_denom
        diff = jnp.abs(g - t_ref[...])
        loss_ref[...] = jnp.sum(diff, keepdims=True) * inv_elems


@jax.jit
def _style_loss_impl(x, target):
    a, b, c, d = x.shape
    m, kdim = a * b, c * d
    inv_denom = 1.0 / float(a * b * c * d)
    inv_elems = 1.0 / float(m * m)               # F.l1_loss reduction='mean'

    f = x.reshape(m, kdim)                       # no pad, no dtype cast
    itemsize = jnp.dtype(x.dtype).itemsize
    tk, grid_k, ragged, vmem_limit = _plan_k_tiling(m, kdim, itemsize)

    loss = pl.pallas_call(
        functools.partial(_style_loss_kernel, inv_denom=inv_denom,
                          inv_elems=inv_elems, k_total=kdim, tk=tk,
                          ragged=ragged),
        out_shape=jax.ShapeDtypeStruct((1, 1), jnp.float32),
        grid_spec=pltpu.PrefetchScalarGridSpec(
            num_scalar_prefetch=0,
            grid=(grid_k,),
            in_specs=[
                # Streamed F tile (double-buffered by default).
                pl.BlockSpec((m, tk), lambda kk: (0, kk)),
                # Constant target Gram: single-buffered (index never changes).
                pl.BlockSpec((m, m), lambda kk: (0, 0),
                             pipeline_mode=pl.Buffered(1)),
            ],
            out_specs=pl.BlockSpec((1, 1), lambda kk: (0, 0)),
            scratch_shapes=[pltpu.VMEM((m, m), jnp.float32)],
        ),
        compiler_params=pltpu.CompilerParams(
            dimension_semantics=("arbitrary",),
            vmem_limit_bytes=vmem_limit),
    )(f, target)
    return loss[0, 0]


# ----------------------------------------------------------------------------
# Differentiable entry point (style transfer optimizes the input image).
# Backward: dL/dF = (S + S^T) F * inv_denom * inv_elems with S = sign(G - T);
# it is tiny compared to the forward and runs in plain XLA.
# ----------------------------------------------------------------------------
@jax.custom_vjp
def style_loss(x, target):
    return _style_loss_impl(x, target)


def _style_loss_fwd(x, target):
    return _style_loss_impl(x, target), (x, target)


def _style_loss_bwd(res, g):
    x, target = res
    a, b, c, d = x.shape
    m, kdim = a * b, c * d
    inv_denom = 1.0 / float(a * b * c * d)
    inv_elems = 1.0 / float(m * m)
    f = x.reshape(m, kdim).astype(jnp.float32)
    gram = (f @ f.T) * inv_denom
    s = jnp.sign(gram - target)
    df = ((s + s.T) @ f) * (inv_denom * inv_elems)
    dx = (g * df).reshape(x.shape).astype(x.dtype)
    return dx, jnp.zeros_like(target)


style_loss.defvjp(_style_loss_fwd, _style_loss_bwd)


class StyleLoss:
    """JAX/Pallas port of the PyTorch StyleLoss module."""

    def __init__(self, target_feature):
        # Target Gram matrix computed once ("detached" constant).
        self.target = jax.lax.stop_gradient(gram_matrix(target_feature))
        self.loss = None

    def __call__(self, x):
        self.loss = style_loss(x, self.target)
        # Module forward returns its input unchanged (pass-through layer).
        return x


# ----------------------------------------------------------------------------
# Pure-JAX reference for verification
# ----------------------------------------------------------------------------
def _gram_ref(x):
    a, b, c, d = x.shape
    f = x.reshape(a * b, c * d).astype(jnp.float32)
    return (f @ f.T) / float(a * b * c * d)


if __name__ == "__main__":
    key = jax.random.PRNGKey(0)
    k_tgt, k_in = jax.random.split(key)

    # Small NCHW shapes consistent with the module: (batch, channels, H, W)
    target_feature = jax.random.normal(k_tgt, (2, 4, 16, 16), dtype=jnp.float32)
    x = jax.random.normal(k_in, (2, 4, 16, 16), dtype=jnp.float32)

    module = StyleLoss(target_feature)
    out = module(x)

    out = jax.block_until_ready(out)
    loss = jax.block_until_ready(module.loss)

    # Forward reference check.
    g_ref = _gram_ref(x)
    t_ref = _gram_ref(target_feature)
    loss_ref = jnp.mean(jnp.abs(g_ref - t_ref))

    assert out.shape == x.shape
    assert jnp.allclose(out, x)
    assert jnp.allclose(loss, loss_ref, rtol=1e-5, atol=1e-6), (loss, loss_ref)

    # Gradient (custom VJP) check against pure-JAX autodiff of the reference.
    g_kernel = jax.grad(lambda img: style_loss(img, module.target))(x)
    g_kernel = jax.block_until_ready(g_kernel)
    g_auto = jax.grad(
        lambda img: jnp.mean(jnp.abs(_gram_ref(img) - module.target)))(x)
    assert g_kernel.shape == x.shape
    assert jnp.allclose(g_kernel, g_auto, rtol=1e-4, atol=1e-6), "grad mismatch"

    print("KERNEL_OK")
</pallas_src>

<mosaic_0001>
module attributes {stable_mosaic.version = 11 : i64} {
  func.func @_gram_kernel(%arg0: i32, %arg1: memref<8x256xf32, #tpu.memory_space<vmem>>, %arg2: memref<8x8xf32, #tpu.memory_space<vmem>>) attributes {dimension_semantics = [#tpu.dimension_semantics<arbitrary>], iteration_bounds = array<i64: 1>, scalar_prefetch = 0 : i64, scratch_operands = 0 : i64, tpu.core_type = #tpu.core_type<tc>, window_params = [{transform_indices = @transform_0, window_bounds = array<i64: 8, 256>}, {pipeline_mode = #tpu.pipeline_mode<synchronous>, transform_indices = @transform_1, window_bounds = array<i64: 8, 8>}]} {
    %c0_i32 = arith.constant 0 : i32
    %0 = arith.cmpi eq, %arg0, %c0_i32 : i32
    %1 = arith.extui %0 : i1 to i32
    %c0_i32_0 = arith.constant 0 : i32
    %2 = arith.cmpi ne, %1, %c0_i32_0 : i32
    scf.if %2 {
      %cst_8 = arith.constant 0.000000e+00 : f32
      %11 = vector.broadcast %cst_8 : f32 to vector<8x8xf32>
      %c0_9 = arith.constant 0 : index
      %c0_10 = arith.constant 0 : index
      %12 = vector.load %arg2[%c0_9, %c0_10] : memref<8x8xf32, #tpu.memory_space<vmem>>, vector<8x8xf32>
      tpu.vector_store %arg2[%c0_9, %c0_10], %11 {strides = array<i32>} : memref<8x8xf32, #tpu.memory_space<vmem>>, vector<8x8xf32>,
    } else {
    }
    %c0 = arith.constant 0 : index
    %c0_1 = arith.constant 0 : index
    %3 = vector.load %arg1[%c0, %c0_1] : memref<8x256xf32, #tpu.memory_space<vmem>>, vector<8x256xf32>
    %c0_2 = arith.constant 0 : index
    %c0_3 = arith.constant 0 : index
    %4 = vector.load %arg2[%c0_2, %c0_3] : memref<8x8xf32, #tpu.memory_space<vmem>>, vector<8x8xf32>
    %cst = arith.constant dense<0.000000e+00> : vector<8x8xf32>
    %5 = tpu.matmul %3, %3, %cst {dimension_numbers = #tpu.dot_dimension_numbers<[1], [1], [0], [0], [0, 0, 1, 0], [], []>} : vector<8x256xf32>, vector<8x256xf32>, vector<8x8xf32> -> vector<8x8xf32>
    %6 = arith.addf %4, %5 : vector<8x8xf32>
    %c0_4 = arith.constant 0 : index
    %c0_5 = arith.constant 0 : index
    %7 = vector.load %arg2[%c0_4, %c0_5] : memref<8x8xf32, #tpu.memory_space<vmem>>, vector<8x8xf32>
    tpu.vector_store %arg2[%c0_4, %c0_5], %6 {strides = array<i32>} : memref<8x8xf32, #tpu.memory_space<vmem>>, vector<8x8xf32>,
    %c0_i32_6 = arith.constant 0 : i32
    %8 = arith.cmpi eq, %arg0, %c0_i32_6 : i32
    %9 = arith.extui %8 : i1 to i32
    %c0_i32_7 = arith.constant 0 : i32
    %10 = arith.cmpi ne, %9, %c0_i32_7 : i32
    scf.if %10 {
      %c0_8 = arith.constant 0 : index
      %c0_9 = arith.constant 0 : index
      %11 = vector.load %arg2[%c0_8, %c0_9] : memref<8x8xf32, #tpu.memory_space<vmem>>, vector<8x8xf32>
      %cst_10 = arith.constant 4.8828125E-4 : f32
      %12 = vector.broadcast %cst_10 : f32 to vector<8x8xf32>
      %13 = arith.mulf %11, %12 : vector<8x8xf32>
      %c0_11 = arith.constant 0 : index
      %c0_12 = arith.constant 0 : index
      %14 = vector.load %arg2[%c0_11, %c0_12] : memref<8x8xf32, #tpu.memory_space<vmem>>, vector<8x8xf32>
      tpu.vector_store %arg2[%c0_11, %c0_12], %13 {strides = array<i32>} : memref<8x8xf32, #tpu.memory_space<vmem>>, vector<8x8xf32>,
    } else {
    }
    return
  }
  func.func @transform_0(%arg0: i32) -> (i32, i32) {
    %c0_i32 = arith.constant 0 : i32
    %c0_i32_0 = arith.constant 0 : i32
    return %c0_i32, %arg0 : i32, i32
  }
  func.func @transform_1(%arg0: i32) -> (i32, i32) {
    %c0_i32 = arith.constant 0 : i32
    %c0_i32_0 = arith.constant 0 : i32
    %c0_i32_1 = arith.constant 0 : i32
    return %c0_i32, %c0_i32_0 : i32, i32
  }
}

</mosaic_0001>

<llo_original>
// kernel: _gram_matrix_impl.1
$region0: #{_gram_matrix_impl.1}
  #allocation0 [shape = 'u32[]', space=smem, size = 0x4, offset = 0x4, fixed_abs, tag = 'smem constant byte address 0x4 - core index']
  #allocation1 [shape = 'u32[144,128]{1,0:T(1,128)}', space=vmem, size = 0x12000, scoped, tag = 'internal scratch']
  %s0 = inlined_call_operand.vmem [shape: f32[8,256], index: 0, kind: input, shape index: {}]
  %s1 = inlined_call_operand.hbm [shape: f32[8,8], index: 1, kind: output, shape index: {}]
  %s2 = sld [smem:[#allocation0]]
  $region22: #{_gram_matrix_impl.1} parent=0
    _
  %s4 = ssub.s32 1, %s2
  %s5 = scalar_select 0, %s4, %s2
  $region1: #{_gram_matrix_impl.1} parent=0
    #allocation2 [shape = 'u8[4096]{0}', space=vmem, size = 0x1000, scoped, tag = 'output window, operand 0, single buffered']
    #allocation3 [shape = 's32[1]{0}', space=sflag, size = 0x4, scoped, tag = 'scoped memory for _gram_matrix_impl.1']
    %6 = vsyncpa [#allocation3], 0
    // Predicated region
    $region2: #{_gram_matrix_impl.1} parent=1 // pred_check
      _
    $region3: #{_gram_matrix_impl.1} parent=1 // pred_check_branch
      %8 = sbr.rel (0) target = $region5
    $region4: #{_gram_matrix_impl.1} parent=1 // pred_region
      _
    $region5: #{_gram_matrix_impl.1} parent=1 // pred_fallthru
      _
    %p9 = scmp.eq.s32.totalorder 0, 0
    // Predicated region
    $region6: #{_gram_matrix_impl.1} parent=1 // pred_check
      %p10 = pneg %p9
    $region7: #{_gram_matrix_impl.1} parent=1 // pred_check_branch
      %12 = sbr.rel (%p10) target = $region9
    $region8: #{_gram_matrix_impl.1} parent=1 // pred_region
      %vm13 = vcmask 64512
      %14 = vst.msk [vmem:[#allocation2] sm:$0xff] %vm13, 0.0
    $region9: #{_gram_matrix_impl.1} parent=1 // pred_fallthru
      _
    %v15 = vld [vmem:[%s0] sm:$0xff]
    %v16 = vld [vmem:[%s0 + $0x8] sm:$0xff]
    %v17 = vld [vmem:[#allocation2] sm:$0xff]
    %18 = vmatprep.subr.mxu0 %v16
    %19 = vmatpush1.xpose.msra.mxu0 %v15
    %20 = vmatprep.subr.mxu0 0.0
    %21 = vmatpush1.xpose.msra.mxu0 0.0
    %22 = vmatprep.subr.mxu0 0.0
    %23 = vmatpush1.xpose.msra.mxu0 0.0
    %24 = vmatprep.subr.mxu0 0.0
    %25 = vmatpush1.xpose.msra.mxu0 0.0
    %26 = vmatprep.subr.mxu0 0.0
    %27 = vmatpush1.xpose.msra.mxu0 0.0
    %28 = vmatprep.subr.mxu0 0.0
    %29 = vmatpush1.xpose.msra.mxu0 0.0
    %30 = vmatprep.subr.mxu0 0.0
    %31 = vmatpush1.xpose.msra.mxu0 0.0
    %32 = vmatprep.subr.mxu0 0.0
    %33 = vmatpush1.xpose.msra.mxu0 0.0
    %34 = vmatprep.subr.mxu0 0.0
    %35 = vmatpush1.xpose.msra.mxu0 0.0
    %36 = vmatprep.subr.mxu0 0.0
    %37 = vmatpush1.xpose.msra.mxu0 0.0
    %38 = vmatprep.subr.mxu0 0.0
    %39 = vmatpush1.xpose.msra.mxu0 0.0
    %40 = vmatprep.subr.mxu0 0.0
    %41 = vmatpush1.xpose.msra.mxu0 0.0
    %42 = vmatprep.subr.mxu0 0.0
    %43 = vmatpush1.xpose.msra.mxu0 0.0
    %44 = vmatprep.subr.mxu0 0.0
    %45 = vmatpush1.xpose.msra.mxu0 0.0
    %46 = vmatprep.subr.mxu0 0.0
    %47 = vmatpush1.xpose.msra.mxu0 0.0
    %48 = vmatprep.subr.mxu0 0.0
    %49 = vmatpush1.xpose.msra.mxu0 0.0
    %50 = vmatprep.subr.mxu0 0.0
    %51 = vmatpush1.xpose.msra.mxu0 0.0
    %52 = vmatprep.subr.mxu0 0.0
    %53 = vmatpush1.xpose.msra.mxu0 0.0
    %54 = vmatprep.subr.mxu0 0.0
    %55 = vmatpush1.xpose.msra.mxu0 0.0
    %56 = vmatprep.subr.mxu0 0.0
    %57 = vmatpush1.xpose.msra.mxu0 0.0
    %58 = vmatprep.subr.mxu0 0.0
    %59 = vmatpush1.xpose.msra.mxu0 0.0
    %60 = vmatprep.subr.mxu0 0.0
    %61 = vmatpush1.xpose.msra.mxu0 0.0
    %62 = vmatprep.subr.mxu0 0.0
    %63 = vmatpush1.xpose.msra.mxu0 0.0
    %64 = vmatprep.subr.mxu0 0.0
    %65 = vmatpush1.xpose.msra.mxu0 0.0
    %66 = vmatprep.subr.mxu0 0.0
    %67 = vmatpush1.xpose.msra.mxu0 0.0
    %68 = vmatprep.subr.mxu0 0.0
    %69 = vmatpush1.xpose.msra.mxu0 0.0
    %70 = vmatprep.subr.mxu0 0.0
    %71 = vmatpush1.xpose.msra.mxu0 0.0
    %72 = vmatprep.subr.mxu0 0.0
    %73 = vmatpush1.xpose.msra.mxu0 0.0
    %74 = vmatprep.subr.mxu0 0.0
    %75 = vmatpush1.xpose.msra.mxu0 0.0
    %76 = vmatprep.subr.mxu0 0.0
    %77 = vmatpush1.xpose.msra.mxu0 0.0
    %78 = vmatprep.subr.mxu0 0.0
    %79 = vmatpush1.xpose.msra.mxu0 0.0
    %80 = vmatprep.subr.mxu0 0.0
    %81 = vmatpush1.xpose.msra.mxu0 0.0
    %82 = vmatprep.mubr.f32.mxu0 %v16
    %83 = vmatmul.mubr.f32.gmra.mrb[0].mxu0 %v15
    %v84 = vpop.f32.mrb[0].mxu0
    %v85 = vadd.f32 0.0, %v84
    %v86 = vpop.f32.mrb[0].mxu0
    %87 = vdwg.mxu0
    %v88 = vadd.f32 %v17, %v85
    %vm89 = vcmask 64512
    %90 = vst.msk [vmem:[#allocation2] sm:$0xff] %vm89, %v88
    // Predicated region
    $region10: #{_gram_matrix_impl.1} parent=1 // pred_check
      %p91 = pneg %p9
    $region11: #{_gram_matrix_impl.1} parent=1 // pred_check_branch
      %93 = sbr.rel (%p91) target = $region13
    $region12: #{_gram_matrix_impl.1} parent=1 // pred_region
      %v94 = vld [vmem:[#allocation2] sm:$0xff]
      %v95 = vmul.f32 %v94, 0.00048828125
      %96 = vst.msk [vmem:[#allocation2] sm:$0xff] %vm89, %v95
    $region13: #{_gram_matrix_impl.1} parent=1 // pred_fallthru
      _
    // Predicated region
    $region14: #{_gram_matrix_impl.1} parent=1 // pred_check
      _
    $region15: #{_gram_matrix_impl.1} parent=1 // pred_check_branch
      %98 = sbr.rel (0) target = $region17
    $region16: #{_gram_matrix_impl.1} parent=1 // pred_region
      %s100 = ssub.s32 128, 128
      %101 = vsyncadd [#allocation3], %s100
      %s103 = sshll.u32 [#allocation2], 4
      %s104 = int_to_ptr.vmem [resolvable:$true] %s103
      %106 = dma.vmem_to_hbm [thread:$0]  %s104, 128, %s1, [#allocation3]
    $region17: #{_gram_matrix_impl.1} parent=1 // pred_fallthru
      _
    // Predicated region
    $region18: #{_gram_matrix_impl.1} parent=1 // pred_check
      _
    $region19: #{_gram_matrix_impl.1} parent=1 // pred_check_branch
      %108 = sbr.rel (0) target = $region21
    $region20: #{_gram_matrix_impl.1} parent=1 // pred_region
      %109 = dma.done [#allocation3], 128
    $region21: #{_gram_matrix_impl.1} parent=1 // pred_fallthru
      _
    %110 = vsyncpa [#allocation3], 1

</llo_original>
